<compile_context>
chip_gen: v5e
topology: v5e:2x2
jax: 0.10.0
libtpu: 0.0.40
codegen_flags: <defaults>
</compile_context>

<pallas_src>
import jax
import jax.numpy as jnp
from jax.experimental import pallas as pl
from jax.experimental.pallas import tpu as pltpu

# Torchvision normalization constants (the module's registered buffers).
_MEAN = jnp.array([0.485, 0.456, 0.406], dtype=jnp.float32)
_STD = jnp.array([0.229, 0.224, 0.225], dtype=jnp.float32)


def _normalize_kernel(mean_ref, inv_std_ref, x_ref, o_ref):
    # mean_ref / inv_std_ref: (block_rows, 1) f32 columns (one value per (n,c) row),
    # broadcast across the lane dimension. x_ref/o_ref: (block_rows, block_cols).
    xf = x_ref[...].astype(jnp.float32)
    o_ref[...] = ((xf - mean_ref[...]) * inv_std_ref[...]).astype(o_ref.dtype)


def torchvision_normalize(x: jax.Array) -> jax.Array:
    """(x - mean) / std with per-channel torchvision constants. x is NCHW."""
    N, C, H, W = x.shape
    assert C == 3, "TorchVisionNormalizer expects 3 input channels (RGB)"
    HW = H * W
    R = N * C

    # Host-side, exact f32 precompute (done once, outside the kernel).
    mean32 = _MEAN
    inv_std32 = (jnp.float32(1.0) / _STD).astype(jnp.float32)

    # Per-row (per (n, c) plane) f32 columns, broadcast inside the kernel.
    mean_col = jnp.tile(mean32, N).reshape(R, 1)
    inv_col = jnp.tile(inv_std32, N).reshape(R, 1)

    # Free layout plumbing: NCHW -> (N*C, H*W), lane-dense last dim.
    x2 = x.reshape(R, HW)

    # ---- Tiling ------------------------------------------------------------
    # Lane (last-dim) tile: full H*W if it is small, else a 128-aligned chunk.
    max_cols = 1 << 16  # 65536 lanes
    block_cols = HW if HW <= max_cols else max_cols  # 65536 is a multiple of 128

    # Sublane (row) tile: as many rows as fit ~2 MiB of f32 per tile, either the
    # full row count or a multiple of 8 (keeps the (8,128) block constraint).
    target_elems = 1 << 19  # ~2 MiB f32 per tile
    rows_cap = max(1, target_elems // block_cols)
    if rows_cap >= R:
        block_rows = R
    else:
        block_rows = min(R, max(8, (rows_cap // 8) * 8))

    grid = (pl.cdiv(R, block_rows), pl.cdiv(HW, block_cols))

    out2 = pl.pallas_call(
        _normalize_kernel,
        out_shape=jax.ShapeDtypeStruct((R, HW), x.dtype),
        grid=grid,
        in_specs=[
            pl.BlockSpec((block_rows, 1), lambda i, j: (i, 0)),          # mean col
            pl.BlockSpec((block_rows, 1), lambda i, j: (i, 0)),          # 1/std col
            pl.BlockSpec((block_rows, block_cols), lambda i, j: (i, j)),  # x
        ],
        out_specs=pl.BlockSpec((block_rows, block_cols), lambda i, j: (i, j)),
        compiler_params=pltpu.CompilerParams(
            dimension_semantics=("parallel", "parallel")),
    )(mean_col, inv_col, x2)

    return out2.reshape(N, C, H, W)


if __name__ == "__main__":
    key = jax.random.PRNGKey(0)
    # Small NCHW input consistent with the module: batch=2, channels=3, 16x16.
    x = jax.random.uniform(key, (2, 3, 16, 16), dtype=jnp.float32)

    out = jax.block_until_ready(torchvision_normalize(x))

    # Pure-JAX reference matching the PyTorch forward exactly: sub then div.
    ref = (x - _MEAN[None, :, None, None]) / _STD[None, :, None, None]

    assert out.shape == x.shape and out.dtype == x.dtype
    assert jnp.allclose(out, ref, rtol=1e-6, atol=1e-6)
    print("KERNEL_OK")
</pallas_src>

<mosaic_0001>
module attributes {stable_mosaic.version = 11 : i64} {
  func.func @_normalize_kernel(%arg0: i32, %arg1: i32, %arg2: memref<6x1xf32, #tpu.memory_space<vmem>>, %arg3: memref<6x1xf32, #tpu.memory_space<vmem>>, %arg4: memref<6x256xf32, #tpu.memory_space<vmem>>, %arg5: memref<6x256xf32, #tpu.memory_space<vmem>>) attributes {dimension_semantics = [#tpu.dimension_semantics<parallel>, #tpu.dimension_semantics<parallel>], iteration_bounds = array<i64: 1, 1>, scalar_prefetch = 0 : i64, scratch_operands = 0 : i64, tpu.core_type = #tpu.core_type<tc>, window_params = [{transform_indices = @transform_0, window_bounds = array<i64: 6, 1>}, {transform_indices = @transform_1, window_bounds = array<i64: 6, 1>}, {transform_indices = @transform_2, window_bounds = array<i64: 6, 256>}, {transform_indices = @transform_3, window_bounds = array<i64: 6, 256>}]} {
    %c0 = arith.constant 0 : index
    %c0_0 = arith.constant 0 : index
    %0 = vector.load %arg4[%c0, %c0_0] : memref<6x256xf32, #tpu.memory_space<vmem>>, vector<6x256xf32>
    %c0_1 = arith.constant 0 : index
    %c0_2 = arith.constant 0 : index
    %1 = vector.load %arg2[%c0_1, %c0_2] : memref<6x1xf32, #tpu.memory_space<vmem>>, vector<6x1xf32>
    %2 = vector.broadcast %1 : vector<6x1xf32> to vector<6x256xf32>
    %3 = arith.subf %0, %2 : vector<6x256xf32>
    %c0_3 = arith.constant 0 : index
    %c0_4 = arith.constant 0 : index
    %4 = vector.load %arg3[%c0_3, %c0_4] : memref<6x1xf32, #tpu.memory_space<vmem>>, vector<6x1xf32>
    %5 = vector.broadcast %4 : vector<6x1xf32> to vector<6x256xf32>
    %6 = arith.mulf %3, %5 : vector<6x256xf32>
    %c0_5 = arith.constant 0 : index
    %c0_6 = arith.constant 0 : index
    %7 = vector.load %arg5[%c0_5, %c0_6] : memref<6x256xf32, #tpu.memory_space<vmem>>, vector<6x256xf32>
    tpu.vector_store %arg5[%c0_5, %c0_6], %6 {strides = array<i32>} : memref<6x256xf32, #tpu.memory_space<vmem>>, vector<6x256xf32>,
    return
  }
  func.func @transform_0(%arg0: i32, %arg1: i32) -> (i32, i32) {
    %c0_i32 = arith.constant 0 : i32
    %c0_i32_0 = arith.constant 0 : i32
    return %arg0, %c0_i32 : i32, i32
  }
  func.func @transform_1(%arg0: i32, %arg1: i32) -> (i32, i32) {
    %c0_i32 = arith.constant 0 : i32
    %c0_i32_0 = arith.constant 0 : i32
    return %arg0, %c0_i32 : i32, i32
  }
  func.func @transform_2(%arg0: i32, %arg1: i32) -> (i32, i32) {
    %c0_i32 = arith.constant 0 : i32
    return %arg0, %arg1 : i32, i32
  }
  func.func @transform_3(%arg0: i32, %arg1: i32) -> (i32, i32) {
    %c0_i32 = arith.constant 0 : i32
    return %arg0, %arg1 : i32, i32
  }
}

</mosaic_0001>

<llo_original>
// kernel: tpu_custom_call.1
$region0: #{tpu_custom_call.1}
  #allocation0 [shape = 'u32[]', space=smem, size = 0x4, offset = 0x4, fixed_abs, tag = 'smem constant byte address 0x4 - core index']
  #allocation1 [shape = 'u32[72,128]{1,0:T(1,128)}', space=vmem, size = 0x9000, scoped, tag = 'internal scratch']
  %s0 = inlined_call_operand.vmem [shape: f32[6,1], index: 0, kind: input, shape index: {}]
  %s1 = inlined_call_operand.vmem [shape: f32[6,1], index: 1, kind: input, shape index: {}]
  %s2 = inlined_call_operand.vmem [shape: f32[6,256], index: 2, kind: input, shape index: {}]
  %s3 = inlined_call_operand.hbm [shape: f32[6,256], index: 3, kind: output, shape index: {}]
  %s4 = sld [smem:[#allocation0]]
  $region22: #{tpu_custom_call.1} parent=0
    _
  %s6 = ssub.s32 1, %s4
  %s7 = scalar_select 0, %s6, %s4
  $region1: #{tpu_custom_call.1} parent=0
    #allocation2 [shape = 'u8[8192]{0}', space=vmem, size = 0x2000, scoped, tag = 'output window, operand 0, single buffered']
    #allocation3 [shape = 's32[1]{0}', space=sflag, size = 0x4, scoped, tag = 'scoped memory for tpu_custom_call.1']
    %8 = vsyncpa [#allocation3], 0
    // Predicated region
    $region2: #{tpu_custom_call.1} parent=1 // pred_check
      _
    $region3: #{tpu_custom_call.1} parent=1 // pred_check_branch
      %10 = sbr.rel (0) target = $region5
    $region4: #{tpu_custom_call.1} parent=1 // pred_region
      _
    $region5: #{tpu_custom_call.1} parent=1 // pred_fallthru
      _
    // Predicated region
    $region6: #{tpu_custom_call.1} parent=1 // pred_check
      _
    $region7: #{tpu_custom_call.1} parent=1 // pred_check_branch
      %12 = sbr.rel (0) target = $region9
    $region8: #{tpu_custom_call.1} parent=1 // pred_region
      _
    $region9: #{tpu_custom_call.1} parent=1 // pred_fallthru
      _
    // Predicated region
    $region10: #{tpu_custom_call.1} parent=1 // pred_check
      _
    $region11: #{tpu_custom_call.1} parent=1 // pred_check_branch
      %14 = sbr.rel (0) target = $region13
    $region12: #{tpu_custom_call.1} parent=1 // pred_region
      _
    $region13: #{tpu_custom_call.1} parent=1 // pred_fallthru
      _
    %v15 = vld [vmem:[%s2] sm:$0x3f]
    %v16 = vld [vmem:[%s2 + $0x8] sm:$0x3f]
    %v17 = vld [vmem:[%s0] sm:$0x3f]
    %19 = vset.pattern.permute.xlu0 0
    %20 = vperm.xlu0 %19, %v17
    %v21 = vpop.permute.xlu0 %20
    %v23 = vsub.f32 %v15, %v21
    %v24 = vsub.f32 %v16, %v21
    %v25 = vld [vmem:[%s1] sm:$0x3f]
    %27 = vset.pattern.permute.xlu0 0
    %28 = vperm.xlu0 %27, %v25
    %v29 = vpop.permute.xlu0 %28
    %v31 = vmul.f32 %v23, %v29
    %v32 = vmul.f32 %v24, %v29
    %33 = vst [vmem:[#allocation2] sm:$0x3f] %v31
    %34 = vst [vmem:[#allocation2 + $0x8] sm:$0x3f] %v32
    // Predicated region
    $region14: #{tpu_custom_call.1} parent=1 // pred_check
      _
    $region15: #{tpu_custom_call.1} parent=1 // pred_check_branch
      %36 = sbr.rel (0) target = $region17
    $region16: #{tpu_custom_call.1} parent=1 // pred_region
      %38 = vsyncadd [#allocation3], 0
      %s40 = sshll.u32 [#allocation2], 4
      %s41 = int_to_ptr.vmem [resolvable:$true] %s40
      %s42 = sshll.u32 %s3, 4
      %s43 = int_to_ptr.hbm [resolvable:$true] %s42
      %45 = dma.vmem_to_hbm [thread:$0]  %s41, 256, %s43, [#allocation3]
    $region17: #{tpu_custom_call.1} parent=1 // pred_fallthru
      _
    // Predicated region
    $region18: #{tpu_custom_call.1} parent=1 // pred_check
      _
    $region19: #{tpu_custom_call.1} parent=1 // pred_check_branch
      %47 = sbr.rel (0) target = $region21
    $region20: #{tpu_custom_call.1} parent=1 // pred_region
      %49 = dma.done [#allocation3], 256
    $region21: #{tpu_custom_call.1} parent=1 // pred_fallthru
      _
    %50 = vsyncpa [#allocation3], 1

</llo_original>
